<compile_context>
chip_gen: v5e
topology: v5e:2x2
jax: 0.10.0
libtpu: 0.0.40
codegen_flags: <defaults>
</compile_context>

<pallas_src>
import functools
import math

import jax
import jax.numpy as jnp
from jax.experimental import pallas as pl
from jax.experimental.pallas import tpu as pltpu


# --------------------------------------------------------------------------- #
# Kernels
# --------------------------------------------------------------------------- #
def _linear_kernel_nosplit(x_ref, w_ref, *rest, has_bias):
    """Single-K-tile kernel (gk == 1): out tile = x_tile @ w_tile^T (+ bias)."""
    if has_bias:
        b_ref, o_ref = rest
    else:
        (o_ref,) = rest

    w = w_ref[...]
    if w.dtype != x_ref.dtype:          # static check; no-op when dtypes match
        w = w.astype(x_ref.dtype)

    # (tm, tk) contracted with (tn, tk) along K -> (tm, tn); no weight transpose.
    acc = jax.lax.dot_general(
        x_ref[...], w,
        dimension_numbers=(((1,), (1,)), ((), ())),
        preferred_element_type=jnp.float32)

    if has_bias:
        acc = acc + b_ref[...].astype(jnp.float32)
    o_ref[...] = acc.astype(o_ref.dtype)


def _linear_kernel_ksplit(x_ref, w_ref, *rest, has_bias):
    """K-split kernel (gk > 1): accumulate into an f32 VMEM scratch."""
    if has_bias:
        b_ref, o_ref, acc_ref = rest
    else:
        o_ref, acc_ref = rest

    k = pl.program_id(2)

    @pl.when(k == 0)
    def _():
        acc_ref[...] = jnp.zeros_like(acc_ref)

    w = w_ref[...]
    if w.dtype != x_ref.dtype:
        w = w.astype(x_ref.dtype)

    acc_ref[...] += jax.lax.dot_general(
        x_ref[...], w,
        dimension_numbers=(((1,), (1,)), ((), ())),
        preferred_element_type=jnp.float32)

    @pl.when(k == pl.num_programs(2) - 1)
    def _():
        out = acc_ref[...]
        if has_bias:
            out = out + b_ref[...].astype(jnp.float32)
        o_ref[...] = out.astype(o_ref.dtype)


# --------------------------------------------------------------------------- #
# Wrapper
# --------------------------------------------------------------------------- #
def _pick_tile(dim, candidates):
    for c in candidates:
        if dim % c == 0:
            return c
    return dim                          # full-extent block is always legal


def _vmem_budget_bytes():
    """Per-generation scoped-VMEM budget for tile sizing / vmem_limit_bytes."""
    try:
        kind = jax.devices()[0].device_kind.lower()
    except Exception:
        kind = ""
    if "v7" in kind:
        return 44 << 20                 # 64 MiB physical per TC on v7x
    if "v5" in kind or "v6" in kind:
        return 96 << 20                 # 128 MiB physical on v5e / v6e
    return 48 << 20                     # conservative default (CPU interpret etc.)


def si_linear(x, weight, bias=None, *, noise_std=0.0, seed=0,
              tm=None, tn=None, tk=None, out_dtype=None):
    """y = x @ (W + noise_std*N_w)^T + (b + noise_std*N_b)."""
    orig_shape = x.shape
    in_f = orig_shape[-1]
    x2 = x.reshape(-1, in_f)
    B = x2.shape[0]
    out_f, in_f2 = weight.shape
    assert in_f == in_f2, (x.shape, weight.shape)
    out_dtype = out_dtype or x.dtype
    has_bias = bias is not None

    # --- Noise: drawn once per call (like torch.randn_like) and folded into the
    # operands; XLA fuses these adds.  noise_std == 0 leaves operands untouched.
    w_eff, b_eff = weight, bias
    if noise_std:
        kw, kb = jax.random.split(jax.random.PRNGKey(seed))
        w_eff = weight + jnp.asarray(noise_std, weight.dtype) * \
            jax.random.normal(kw, weight.shape, weight.dtype)
        if has_bias:
            b_eff = bias + jnp.asarray(noise_std, bias.dtype) * \
                jax.random.normal(kb, bias.shape, bias.dtype)

    x_size = jnp.dtype(x2.dtype).itemsize
    w_size = jnp.dtype(weight.dtype).itemsize
    o_size = jnp.dtype(out_dtype).itemsize
    budget = _vmem_budget_bytes()

    # Batch tile: largest 128-aligned tile that divides B (small B -> full B).
    if tm is None:
        tm = _pick_tile(B, (512, 256, 128, 64, 32, 16, 8))

    def _fits(cand_tn, cand_tk):
        gk_c = in_f // cand_tk
        tile = 2 * (tm * cand_tk * x_size            # x (double-buffered)
                    + cand_tn * cand_tk * w_size     # weight
                    + cand_tn * max(w_size, 4)       # bias row
                    + tm * cand_tn * o_size)         # output
        if gk_c > 1:
            tile += tm * cand_tn * 4                 # f32 accumulator scratch
        return tile <= budget

    # Prefer gk == 1 (tk == in_f): weight streamed exactly once, no K loop.
    # Only fall back to splitting K (or narrower N tiles) when it doesn't fit.
    if tn is None or tk is None:
        tn_cands = [c for c in (512, 256, 128) if out_f % c == 0] or [out_f]
        tk_cands = [c for c in (in_f, 2048, 1024, 512, 256, 128) if in_f % c == 0]
        choice = None
        for cand_tk in tk_cands:                     # full-K first
            for cand_tn in tn_cands:                 # widest lane-dense N tile
                if _fits(cand_tn, cand_tk):
                    choice = (cand_tn, cand_tk)
                    break
            if choice is not None:
                break
        if choice is None:
            choice = (tn_cands[-1], tk_cands[-1])
        tn = tn if tn is not None else choice[0]
        tk = tk if tk is not None else choice[1]

    assert B % tm == 0 and out_f % tn == 0 and in_f % tk == 0, (tm, tn, tk)
    gm, gn, gk = B // tm, out_f // tn, in_f // tk

    b2 = b_eff.reshape(1, out_f) if has_bias else None

    # Advisory cost estimate matching the actual streaming pattern.
    flops = 2 * B * in_f * out_f
    bytes_accessed = (gn * B * in_f * x_size
                      + (1 if gk == 1 else gm) * out_f * in_f * w_size
                      + B * out_f * o_size
                      + (out_f * w_size if has_bias else 0))
    cost = pl.CostEstimate(flops=flops, transcendentals=0,
                           bytes_accessed=int(bytes_accessed))

    # Grid order: N outermost (weight block index constant across the batch
    # loop -> weight DMA skipped across batch tiles when gk == 1), M next,
    # reduction K innermost.  N/M "parallel" -> megacore sharding on v7x.
    if gk == 1:
        grid = (gn, gm)
        in_specs = [pl.BlockSpec((tm, tk), lambda j, i: (i, 0)),   # x
                    pl.BlockSpec((tn, tk), lambda j, i: (j, 0))]   # weight
        if has_bias:
            in_specs.append(pl.BlockSpec((1, tn), lambda j, i: (0, j)))
        out_specs = pl.BlockSpec((tm, tn), lambda j, i: (i, j))
        scratch_shapes = []
        kernel = functools.partial(_linear_kernel_nosplit, has_bias=has_bias)
        dim_sem = ("parallel", "parallel")
    else:
        grid = (gn, gm, gk)
        in_specs = [pl.BlockSpec((tm, tk), lambda j, i, k: (i, k)),   # x
                    pl.BlockSpec((tn, tk), lambda j, i, k: (j, k))]   # weight
        if has_bias:
            in_specs.append(pl.BlockSpec((1, tn), lambda j, i, k: (0, j)))
        out_specs = pl.BlockSpec((tm, tn), lambda j, i, k: (i, j))
        scratch_shapes = [pltpu.VMEM((tm, tn), jnp.float32)]
        kernel = functools.partial(_linear_kernel_ksplit, has_bias=has_bias)
        dim_sem = ("parallel", "parallel", "arbitrary")

    args = [x2, w_eff] + ([b2] if has_bias else [])

    out2 = pl.pallas_call(
        kernel,
        out_shape=jax.ShapeDtypeStruct((B, out_f), out_dtype),
        grid=grid,
        in_specs=in_specs,
        out_specs=out_specs,
        scratch_shapes=scratch_shapes,
        compiler_params=pltpu.CompilerParams(
            dimension_semantics=dim_sem,
            vmem_limit_bytes=int(budget)),
        cost_estimate=cost,
    )(*args)

    return out2.reshape(orig_shape[:-1] + (out_f,))


# --------------------------------------------------------------------------- #
# Self-test
# --------------------------------------------------------------------------- #
if __name__ == "__main__":
    key = jax.random.PRNGKey(0)
    k_x, k_w, k_b = jax.random.split(key, 3)

    # Small, lane-aligned shapes (in/out multiples of 128, B multiple of 8).
    B, in_features, out_features = 16, 512, 256

    # Deterministic init mimicking kaiming_uniform_(a=sqrt(5)) / bias bound.
    gain = math.sqrt(2.0 / (1.0 + 5.0))
    w_bound = gain * math.sqrt(3.0 / in_features)
    weight = jax.random.uniform(
        k_w, (out_features, in_features), jnp.float32, -w_bound, w_bound)
    b_bound = 1.0 / math.sqrt(in_features)
    bias = jax.random.uniform(k_b, (out_features,), jnp.float32, -b_bound, b_bound)
    x = jax.random.normal(k_x, (B, in_features), jnp.float32)

    def ref_linear(xv, wv, bv):
        y = jax.lax.dot_general(xv, wv, dimension_numbers=(((1,), (1,)), ((), ())))
        return y if bv is None else y + bv[None, :]

    # 1) noise_std = 0, default tile selection (gk == 1 fast path).
    out_clean = jax.block_until_ready(si_linear(x, weight, bias, noise_std=0.0))
    assert out_clean.shape == (B, out_features)
    assert jnp.allclose(out_clean, ref_linear(x, weight, bias),
                        atol=1e-2, rtol=1e-2), \
        float(jnp.max(jnp.abs(out_clean - ref_linear(x, weight, bias))))

    # 1b) bias=None path.
    out_nb = jax.block_until_ready(si_linear(x, weight, None, noise_std=0.0))
    assert jnp.allclose(out_nb, ref_linear(x, weight, None), atol=1e-2, rtol=1e-2)

    # 1c) forced K split (exercises the accumulator kernel): grid (2, 1, 2).
    out_split = jax.block_until_ready(
        si_linear(x, weight, bias, noise_std=0.0, tn=128, tk=256))
    assert jnp.allclose(out_split, ref_linear(x, weight, bias),
                        atol=1e-2, rtol=1e-2)

    # 2) noise_std > 0: exact check against a reference built from the same
    #    noise draws, plus determinism for a fixed seed.
    noise_std, seed = 0.1, 1234
    kw_ref, kb_ref = jax.random.split(jax.random.PRNGKey(seed))
    w_noisy = weight + noise_std * jax.random.normal(kw_ref, weight.shape,
                                                     weight.dtype)
    b_noisy = bias + noise_std * jax.random.normal(kb_ref, bias.shape, bias.dtype)

    out_noisy = jax.block_until_ready(
        si_linear(x, weight, bias, noise_std=noise_std, seed=seed))
    assert out_noisy.shape == (B, out_features)
    assert bool(jnp.all(jnp.isfinite(out_noisy)))
    assert jnp.allclose(out_noisy, ref_linear(x, w_noisy, b_noisy),
                        atol=1e-2, rtol=1e-2)

    out_noisy2 = jax.block_until_ready(
        si_linear(x, weight, bias, noise_std=noise_std, seed=seed))
    assert bool(jnp.array_equal(out_noisy, out_noisy2))

    print("KERNEL_OK")
</pallas_src>

<mosaic_0001>
module attributes {stable_mosaic.version = 11 : i64} {
  func.func @_linear_kernel_nosplit(%arg0: i32, %arg1: i32, %arg2: memref<16x512xf32, #tpu.memory_space<vmem>>, %arg3: memref<256x512xf32, #tpu.memory_space<vmem>>, %arg4: memref<1x256xf32, #tpu.memory_space<vmem>>, %arg5: memref<16x256xf32, #tpu.memory_space<vmem>>) attributes {dimension_semantics = [#tpu.dimension_semantics<parallel>, #tpu.dimension_semantics<parallel>], iteration_bounds = array<i64: 1, 1>, scalar_prefetch = 0 : i64, scratch_operands = 0 : i64, tpu.core_type = #tpu.core_type<tc>, window_params = [{transform_indices = @transform_0, window_bounds = array<i64: 16, 512>}, {transform_indices = @transform_1, window_bounds = array<i64: 256, 512>}, {transform_indices = @transform_2, window_bounds = array<i64: 1, 256>}, {transform_indices = @transform_3, window_bounds = array<i64: 16, 256>}]} {
    %c0 = arith.constant 0 : index
    %c0_0 = arith.constant 0 : index
    %0 = vector.load %arg3[%c0, %c0_0] : memref<256x512xf32, #tpu.memory_space<vmem>>, vector<256x512xf32>
    %c0_1 = arith.constant 0 : index
    %c0_2 = arith.constant 0 : index
    %1 = vector.load %arg2[%c0_1, %c0_2] : memref<16x512xf32, #tpu.memory_space<vmem>>, vector<16x512xf32>
    %cst = arith.constant dense<0.000000e+00> : vector<16x256xf32>
    %2 = tpu.matmul %1, %0, %cst {dimension_numbers = #tpu.dot_dimension_numbers<[1], [1], [0], [0], [0, 0, 1, 0], [], []>} : vector<16x512xf32>, vector<256x512xf32>, vector<16x256xf32> -> vector<16x256xf32>
    %c0_3 = arith.constant 0 : index
    %c0_4 = arith.constant 0 : index
    %3 = vector.load %arg4[%c0_3, %c0_4] : memref<1x256xf32, #tpu.memory_space<vmem>>, vector<1x256xf32>
    %4 = vector.broadcast %3 : vector<1x256xf32> to vector<16x256xf32>
    %5 = arith.addf %2, %4 : vector<16x256xf32>
    %c0_5 = arith.constant 0 : index
    %c0_6 = arith.constant 0 : index
    %6 = vector.load %arg5[%c0_5, %c0_6] : memref<16x256xf32, #tpu.memory_space<vmem>>, vector<16x256xf32>
    tpu.vector_store %arg5[%c0_5, %c0_6], %5 {strides = array<i32>} : memref<16x256xf32, #tpu.memory_space<vmem>>, vector<16x256xf32>,
    return
  }
  func.func @transform_0(%arg0: i32, %arg1: i32) -> (i32, i32) {
    %c0_i32 = arith.constant 0 : i32
    %c0_i32_0 = arith.constant 0 : i32
    return %arg1, %c0_i32 : i32, i32
  }
  func.func @transform_1(%arg0: i32, %arg1: i32) -> (i32, i32) {
    %c0_i32 = arith.constant 0 : i32
    %c0_i32_0 = arith.constant 0 : i32
    return %arg0, %c0_i32 : i32, i32
  }
  func.func @transform_2(%arg0: i32, %arg1: i32) -> (i32, i32) {
    %c0_i32 = arith.constant 0 : i32
    %c0_i32_0 = arith.constant 0 : i32
    return %c0_i32, %arg0 : i32, i32
  }
  func.func @transform_3(%arg0: i32, %arg1: i32) -> (i32, i32) {
    %c0_i32 = arith.constant 0 : i32
    return %arg1, %arg0 : i32, i32
  }
}

</mosaic_0001>

<llo_original>
// kernel: tpu_custom_call.1
$region0: #{tpu_custom_call.1}
  #allocation0 [shape = 'u32[]', space=smem, size = 0x4, offset = 0x4, fixed_abs, tag = 'smem constant byte address 0x4 - core index']
  #allocation1 [shape = 'u32[72,128]{1,0:T(1,128)}', space=vmem, size = 0x9000, scoped, tag = 'internal scratch']
  %s0 = inlined_call_operand.hbm [shape: f32[16,512], index: 0, kind: input, shape index: {}]
  %s1 = inlined_call_operand.hbm [shape: f32[256,512], index: 1, kind: input, shape index: {}]
  %s2 = inlined_call_operand.hbm [shape: f32[1,256], index: 2, kind: input, shape index: {}]
  %s3 = inlined_call_operand.hbm [shape: f32[16,256], index: 3, kind: output, shape index: {}]
  %s4 = sld [smem:[#allocation0]]
  $region34: #{tpu_custom_call.1} parent=0
    _
  %s6 = ssub.s32 1, %s4
  %s7 = scalar_select 0, %s6, %s4
  $region1: #{tpu_custom_call.1} parent=0
    #allocation2 [shape = 'u8[32768]{0}', space=vmem, size = 0x8000, scoped, tag = 'input window, operand 0, single buffered']
    #allocation3 [shape = 's32[1]{0}', space=sflag, size = 0x4, scoped, tag = 'scoped memory for tpu_custom_call.1']
    #allocation4 [shape = 's32[1]{0}', space=sflag, size = 0x4, scoped, tag = 'scoped memory for tpu_custom_call.1']
    #allocation5 [shape = 'u8[524288]{0}', space=vmem, size = 0x80000, scoped, tag = 'input window, operand 1, single buffered']
    #allocation6 [shape = 's32[1]{0}', space=sflag, size = 0x4, scoped, tag = 'scoped memory for tpu_custom_call.1']
    #allocation7 [shape = 'u8[1024]{0}', space=vmem, size = 0x400, scoped, tag = 'input window, operand 2, single buffered']
    #allocation8 [shape = 'u8[16384]{0}', space=vmem, size = 0x4000, scoped, tag = 'output window, operand 0, single buffered']
    %8 = vsyncpa [#allocation3], 0
    %9 = vsyncpa [#allocation6], 0
    %10 = vsyncpa [#allocation4], 0
    // Predicated region
    $region2: #{tpu_custom_call.1} parent=1 // pred_check
      _
    $region3: #{tpu_custom_call.1} parent=1 // pred_check_branch
      %12 = sbr.rel (0) target = $region5
    $region4: #{tpu_custom_call.1} parent=1 // pred_region
      %14 = vsyncadd [#allocation3], 0
      %s15 = sshll.u32 %s0, 4
      %s16 = int_to_ptr.hbm [resolvable:$true] %s15
      %s17 = sshll.u32 [#allocation2], 4
      %s18 = int_to_ptr.vmem [resolvable:$true] %s17
      %23 = dma.hbm_to_vmem [thread:$0]  %s16, 1024, %s18, [#allocation3], 512, 512, 32
    $region5: #{tpu_custom_call.1} parent=1 // pred_fallthru
      _
    // Predicated region
    $region6: #{tpu_custom_call.1} parent=1 // pred_check
      _
    $region7: #{tpu_custom_call.1} parent=1 // pred_check_branch
      %25 = sbr.rel (0) target = $region9
    $region8: #{tpu_custom_call.1} parent=1 // pred_region
      %27 = vsyncadd [#allocation6], 0
      %s28 = sshll.u32 %s1, 4
      %s29 = int_to_ptr.hbm [resolvable:$true] %s28
      %s30 = sshll.u32 [#allocation5], 4
      %s31 = int_to_ptr.vmem [resolvable:$true] %s30
      %36 = dma.hbm_to_vmem [thread:$0]  %s29, 16384, %s31, [#allocation6], 512, 512, 32
    $region9: #{tpu_custom_call.1} parent=1 // pred_fallthru
      _
    // Predicated region
    $region10: #{tpu_custom_call.1} parent=1 // pred_check
      _
    $region11: #{tpu_custom_call.1} parent=1 // pred_check_branch
      %38 = sbr.rel (0) target = $region13
    $region12: #{tpu_custom_call.1} parent=1 // pred_region
      %40 = vsyncadd [#allocation6], 0
      %s42 = sshll.u32 %s2, 4
      %s43 = int_to_ptr.hbm [resolvable:$true] %s42
      %s44 = sshll.u32 [#allocation7], 4
      %s45 = int_to_ptr.vmem [resolvable:$true] %s44
      %47 = dma.hbm_to_vmem [thread:$0]  %s43, 32, %s45, [#allocation6]
    $region13: #{tpu_custom_call.1} parent=1 // pred_fallthru
      _
    // Predicated region
    $region14: #{tpu_custom_call.1} parent=1 // pred_check
      _
    $region15: #{tpu_custom_call.1} parent=1 // pred_check_branch
      %49 = sbr.rel (0) target = $region17
    $region16: #{tpu_custom_call.1} parent=1 // pred_region
      %51 = dma.done [#allocation3], 1024
    $region17: #{tpu_custom_call.1} parent=1 // pred_fallthru
      _
    // Predicated region
    $region18: #{tpu_custom_call.1} parent=1 // pred_check
      _
    $region19: #{tpu_custom_call.1} parent=1 // pred_check_branch
      %53 = sbr.rel (0) target = $region21
    $region20: #{tpu_custom_call.1} parent=1 // pred_region
      %55 = dma.done [#allocation6], 16384
    $region21: #{tpu_custom_call.1} parent=1 // pred_fallthru
      _
    // Predicated region
    $region22: #{tpu_custom_call.1} parent=1 // pred_check
      _
    $region23: #{tpu_custom_call.1} parent=1 // pred_check_branch
      %57 = sbr.rel (0) target = $region25
    $region24: #{tpu_custom_call.1} parent=1 // pred_region
      %59 = dma.done [#allocation6], 32
    $region25: #{tpu_custom_call.1} parent=1 // pred_fallthru
      _
    %v60 = vld [vmem:[#allocation5] sm:$0xff]
    %v61 = vld [vmem:[#allocation5 + $0x8] sm:$0xff]
    %v62 = vld [vmem:[#allocation5 + $0x10] sm:$0xff]
    %v63 = vld [vmem:[#allocation5 + $0x18] sm:$0xff]
    %v64 = vld [vmem:[#allocation5 + $0x20] sm:$0xff]
    %v65 = vld [vmem:[#allocation5 + $0x28] sm:$0xff]
    %v66 = vld [vmem:[#allocation5 + $0x30] sm:$0xff]
    %v67 = vld [vmem:[#allocation5 + $0x38] sm:$0xff]
    %v68 = vld [vmem:[#allocation5 + $0x40] sm:$0xff]
    %v69 = vld [vmem:[#allocation5 + $0x48] sm:$0xff]
    %v70 = vld [vmem:[#allocation5 + $0x50] sm:$0xff]
    %v71 = vld [vmem:[#allocation5 + $0x58] sm:$0xff]
    %v72 = vld [vmem:[#allocation5 + $0x60] sm:$0xff]
    %v73 = vld [vmem:[#allocation5 + $0x68] sm:$0xff]
    %v74 = vld [vmem:[#allocation5 + $0x70] sm:$0xff]
    %v75 = vld [vmem:[#allocation5 + $0x78] sm:$0xff]
    %v76 = vld [vmem:[#allocation5 + $0x80] sm:$0xff]
    %v77 = vld [vmem:[#allocation5 + $0x88] sm:$0xff]
    %v78 = vld [vmem:[#allocation5 + $0x90] sm:$0xff]
    %v79 = vld [vmem:[#allocation5 + $0x98] sm:$0xff]
    %v80 = vld [vmem:[#allocation5 + $0xa0] sm:$0xff]
    %v81 = vld [vmem:[#allocation5 + $0xa8] sm:$0xff]
    %v82 = vld [vmem:[#allocation5 + $0xb0] sm:$0xff]
    %v83 = vld [vmem:[#allocation5 + $0xb8] sm:$0xff]
    %v84 = vld [vmem:[#allocation5 + $0xc0] sm:$0xff]
    %v85 = vld [vmem:[#allocation5 + $0xc8] sm:$0xff]
    %v86 = vld [vmem:[#allocation5 + $0xd0] sm:$0xff]
    %v87 = vld [vmem:[#allocation5 + $0xd8] sm:$0xff]
    %v88 = vld [vmem:[#allocation5 + $0xe0] sm:$0xff]
    %v89 = vld [vmem:[#allocation5 + $0xe8] sm:$0xff]
    %v90 = vld [vmem:[#allocation5 + $0xf0] sm:$0xff]
    %v91 = vld [vmem:[#allocation5 + $0xf8] sm:$0xff]
    %v92 = vld [vmem:[#allocation5 + $0x100] sm:$0xff]
    %v93 = vld [vmem:[#allocation5 + $0x108] sm:$0xff]
    %v94 = vld [vmem:[#allocation5 + $0x110] sm:$0xff]
    %v95 = vld [vmem:[#allocation5 + $0x118] sm:$0xff]
    %v96 = vld [vmem:[#allocation5 + $0x120] sm:$0xff]
    %v97 = vld [vmem:[#allocation5 + $0x128] sm:$0xff]
    %v98 = vld [vmem:[#allocation5 + $0x130] sm:$0xff]
    %v99 = vld [vmem:[#allocation5 + $0x138] sm:$0xff]
    %v100 = vld [vmem:[#allocation5 + $0x140] sm:$0xff]
    %v101 = vld [vmem:[#allocation5 + $0x148] sm:$0xff]
    %v102 = vld [vmem:[#allocation5 + $0x150] sm:$0xff]
    %v103 = vld [vmem:[#allocation5 + $0x158] sm:$0xff]
    %v104 = vld [vmem:[#allocation5 + $0x160] sm:$0xff]
    %v105 = vld [vmem:[#allocation5 + $0x168] sm:$0xff]
    %v106 = vld [vmem:[#allocation5 + $0x170] sm:$0xff]
    %v107 = vld [vmem:[#allocation5 + $0x178] sm:$0xff]
    %v108 = vld [vmem:[#allocation5 + $0x180] sm:$0xff]
    %v109 = vld [vmem:[#allocation5 + $0x188] sm:$0xff]
    %v110 = vld [vmem:[#allocation5 + $0x190] sm:$0xff]
    %v111 = vld [vmem:[#allocation5 + $0x198] sm:$0xff]
    %v112 = vld [vmem:[#allocation5 + $0x1a0] sm:$0xff]
    %v113 = vld [vmem:[#allocation5 + $0x1a8] sm:$0xff]
    %v114 = vld [vmem:[#allocation5 + $0x1b0] sm:$0xff]
    %v115 = vld [vmem:[#allocation5 + $0x1b8] sm:$0xff]
    %v116 = vld [vmem:[#allocation5 + $0x1c0] sm:$0xff]
    %v117 = vld [vmem:[#allocation5 + $0x1c8] sm:$0xff]
    %v118 = vld [vmem:[#allocation5 + $0x1d0] sm:$0xff]
    %v119 = vld [vmem:[#allocation5 + $0x1d8] sm:$0xff]
    %v120 = vld [vmem:[#allocation5 + $0x1e0] sm:$0xff]
    %v121 = vld [vmem:[#allocation5 + $0x1e8] sm:$0xff]
    %v122 = vld [vmem:[#allocation5 + $0x1f0] sm:$0xff]
    %v123 = vld [vmem:[#allocation5 + $0x1f8] sm:$0xff]
    %v124 = vld [vmem:[#allocation5 + $0x200] sm:$0xff]
    %v125 = vld [vmem:[#allocation5 + $0x208] sm:$0xff]
    %v126 = vld [vmem:[#allocation5 + $0x210] sm:$0xff]
    %v127 = vld [vmem:[#allocation5 + $0x218] sm:$0xff]
    %v128 = vld [vmem:[#allocation5 + $0x220] sm:$0xff]
    %v129 = vld [vmem:[#allocation5 + $0x228] sm:$0xff]
    %v130 = vld [vmem:[#allocation5 + $0x230] sm:$0xff]
    %v131 = vld [vmem:[#allocation5 + $0x238] sm:$0xff]
    %v132 = vld [vmem:[#allocation5 + $0x240] sm:$0xff]
    %v133 = vld [vmem:[#allocation5 + $0x248] sm:$0xff]
    %v134 = vld [vmem:[#allocation5 + $0x250] sm:$0xff]
    %v135 = vld [vmem:[#allocation5 + $0x258] sm:$0xff]
    %v136 = vld [vmem:[#allocation5 + $0x260] sm:$0xff]
    %v137 = vld [vmem:[#allocation5 + $0x268] sm:$0xff]
    %v138 = vld [vmem:[#allocation5 + $0x270] sm:$0xff]
    %v139 = vld [vmem:[#allocation5 + $0x278] sm:$0xff]
    %v140 = vld [vmem:[#allocation5 + $0x280] sm:$0xff]
    %v141 = vld [vmem:[#allocation5 + $0x288] sm:$0xff]
    %v142 = vld [vmem:[#allocation5 + $0x290] sm:$0xff]
    %v143 = vld [vmem:[#allocation5 + $0x298] sm:$0xff]
    %v144 = vld [vmem:[#allocation5 + $0x2a0] sm:$0xff]
    %v145 = vld [vmem:[#allocation5 + $0x2a8] sm:$0xff]
    %v146 = vld [vmem:[#allocation5 + $0x2b0] sm:$0xff]
    %v147 = vld [vmem:[#allocation5 + $0x2b8] sm:$0xff]
    %v148 = vld [vmem:[#allocation5 + $0x2c0] sm:$0xff]
    %v149 = vld [vmem:[#allocation5 + $0x2c8] sm:$0xff]
    %v150 = vld [vmem:[#allocation5 + $0x2d0] sm:$0xff]
    %v151 = vld [vmem:[#allocation5 + $0x2d8] sm:$0xff]
    %v152 = vld [vmem:[#allocation5 + $0x2e0] sm:$0xff]
    %v153 = vld [vmem:[#allocation5 + $0x2e8] sm:$0xff]
    %v154 = vld [vmem:[#allocation5 + $0x2f0] sm:$0xff]
    %v155 = vld [vmem:[#allocation5 + $0x2f8] sm:$0xff]
    %v156 = vld [vmem:[#allocation5 + $0x300] sm:$0xff]
    %v157 = vld [vmem:[#allocation5 + $0x308] sm:$0xff]
    %v158 = vld [vmem:[#allocation5 + $0x310] sm:$0xff]
    %v159 = vld [vmem:[#allocation5 + $0x318] sm:$0xff]
    %v160 = vld [vmem:[#allocation5 + $0x320] sm:$0xff]
    %v161 = vld [vmem:[#allocation5 + $0x328] sm:$0xff]
    %v162 = vld [vmem:[#allocation5 + $0x330] sm:$0xff]
    %v163 = vld [vmem:[#allocation5 + $0x338] sm:$0xff]
    %v164 = vld [vmem:[#allocation5 + $0x340] sm:$0xff]
    %v165 = vld [vmem:[#allocation5 + $0x348] sm:$0xff]
    %v166 = vld [vmem:[#allocation5 + $0x350] sm:$0xff]
    %v167 = vld [vmem:[#allocation5 + $0x358] sm:$0xff]
    %v168 = vld [vmem:[#allocation5 + $0x360] sm:$0xff]
    %v169 = vld [vmem:[#allocation5 + $0x368] sm:$0xff]
    %v170 = vld [vmem:[#allocation5 + $0x370] sm:$0xff]
    %v171 = vld [vmem:[#allocation5 + $0x378] sm:$0xff]
    %v172 = vld [vmem:[#allocation5 + $0x380] sm:$0xff]
    %v173 = vld [vmem:[#allocation5 + $0x388] sm:$0xff]
    %v174 = vld [vmem:[#allocation5 + $0x390] sm:$0xff]
    %v175 = vld [vmem:[#allocation5 + $0x398] sm:$0xff]
    %v176 = vld [vmem:[#allocation5 + $0x3a0] sm:$0xff]
    %v177 = vld [vmem:[#allocation5 + $0x3a8] sm:$0xff]
    %v178 = vld [vmem:[#allocation5 + $0x3b0] sm:$0xff]
    %v179 = vld [vmem:[#allocation5 + $0x3b8] sm:$0xff]
    %v180 = vld [vmem:[#allocation5 + $0x3c0] sm:$0xff]
    %v181 = vld [vmem:[#allocation5 + $0x3c8] sm:$0xff]
    %v182 = vld [vmem:[#allocation5 + $0x3d0] sm:$0xff]
    %v183 = vld [vmem:[#allocation5 + $0x3d8] sm:$0xff]
    %v184 = vld [vmem:[#allocation5 + $0x3e0] sm:$0xff]
    %v185 = vld [vmem:[#allocation5 + $0x3e8] sm:$0xff]
    %v186 = vld [vmem:[#allocation5 + $0x3f0] sm:$0xff]
    %v187 = vld [vmem:[#allocation5 + $0x3f8] sm:$0xff]
    %v188 = vld [vmem:[#allocation2] sm:$0xff]
    %v189 = vld [vmem:[#allocation2 + $0x8] sm:$0xff]
    %v190 = vld [vmem:[#allocation2 + $0x10] sm:$0xff]
    %v191 = vld [vmem:[#allocation2 + $0x18] sm:$0xff]
    %v192 = vld [vmem:[#allocation2 + $0x20] sm:$0xff]
    %v193 = vld [vmem:[#allocation2 + $0x28] sm:$0xff]
    %v194 = vld [vmem:[#allocation2 + $0x30] sm:$0xff]
    %v195 = vld [vmem:[#allocation2 + $0x38] sm:$0xff]
    %v196 = vld [vmem:[#allocation7] sm:$0x3]
    %v198 = vperm.slane %v196, 0
    %v199 = vperm.slane %v196, 1
    %202 = vmatpush.xpose.msra.mxu0 %v120
    %203 = vmatpush.xpose.msra.mxu0 %v116
    %204 = vmatpush.xpose.msra.mxu0 %v112
    %205 = vmatpush.xpose.msra.mxu0 %v108
    %206 = vmatpush.xpose.msra.mxu0 %v104
    %207 = vmatpush.xpose.msra.mxu0 %v100
    %208 = vmatpush.xpose.msra.mxu0 %v96
    %209 = vmatpush.xpose.msra.mxu0 %v92
    %210 = vmatpush.xpose.msra.mxu0 %v88
    %211 = vmatpush.xpose.msra.mxu0 %v84
    %212 = vmatpush.xpose.msra.mxu0 %v80
    %213 = vmatpush.xpose.msra.mxu0 %v76
    %214 = vmatpush.xpose.msra.mxu0 %v72
    %215 = vmatpush.xpose.msra.mxu0 %v68
    %216 = vmatpush.xpose.msra.mxu0 %v64
    %217 = vmatpush.xpose.msra.mxu0 %v60
    %218 = vmatmul.f32.gmra.mxu0 %v188
    %v219 = vpop.f32.mrf.mxu0
    %v220 = vadd.f32 %v198, %v219
    %221 = vmatmul.f32.gmra.mxu0 %v192
    %v222 = vpop.f32.mrf.mxu0
    %v223 = vadd.f32 %v198, %v222
    %224 = vdwg.mxu0
    %225 = vmatpush.xpose.msra.mxu0 %v121
    %226 = vmatpush.xpose.msra.mxu0 %v117
    %227 = vmatpush.xpose.msra.mxu0 %v113
    %228 = vmatpush.xpose.msra.mxu0 %v109
    %229 = vmatpush.xpose.msra.mxu0 %v105
    %230 = vmatpush.xpose.msra.mxu0 %v101
    %231 = vmatpush.xpose.msra.mxu0 %v97
    %232 = vmatpush.xpose.msra.mxu0 %v93
    %233 = vmatpush.xpose.msra.mxu0 %v89
    %234 = vmatpush.xpose.msra.mxu0 %v85
    %235 = vmatpush.xpose.msra.mxu0 %v81
    %236 = vmatpush.xpose.msra.mxu0 %v77
    %237 = vmatpush.xpose.msra.mxu0 %v73
    %238 = vmatpush.xpose.msra.mxu0 %v69
    %239 = vmatpush.xpose.msra.mxu0 %v65
    %240 = vmatpush.xpose.msra.mxu0 %v61
    %241 = vmatmul.f32.gmra.mxu0 %v189
    %v242 = vpop.f32.mrf.mxu0
    %v243 = vadd.f32 %v220, %v242
    %244 = vmatmul.f32.gmra.mxu0 %v193
    %v245 = vpop.f32.mrf.mxu0
    %v246 = vadd.f32 %v223, %v245
    %247 = vdwg.mxu0
    %248 = vmatpush.xpose.msra.mxu0 %v122
    %249 = vmatpush.xpose.msra.mxu0 %v118
    %250 = vmatpush.xpose.msra.mxu0 %v114
    %251 = vmatpush.xpose.msra.mxu0 %v110
    %252 = vmatpush.xpose.msra.mxu0 %v106
    %253 = vmatpush.xpose.msra.mxu0 %v102
    %254 = vmatpush.xpose.msra.mxu0 %v98
    %255 = vmatpush.xpose.msra.mxu0 %v94
    %256 = vmatpush.xpose.msra.mxu0 %v90
    %257 = vmatpush.xpose.msra.mxu0 %v86
    %258 = vmatpush.xpose.msra.mxu0 %v82
    %259 = vmatpush.xpose.msra.mxu0 %v78
    %260 = vmatpush.xpose.msra.mxu0 %v74
    %261 = vmatpush.xpose.msra.mxu0 %v70
    %262 = vmatpush.xpose.msra.mxu0 %v66
    %263 = vmatpush.xpose.msra.mxu0 %v62
    %264 = vmatmul.f32.gmra.mxu0 %v190
    %v265 = vpop.f32.mrf.mxu0
    %v266 = vadd.f32 %v243, %v265
    %267 = vmatmul.f32.gmra.mxu0 %v194
    %v268 = vpop.f32.mrf.mxu0
    %v269 = vadd.f32 %v246, %v268
    %270 = vdwg.mxu0
    %271 = vmatpush.xpose.msra.mxu0 %v123
    %272 = vmatpush.xpose.msra.mxu0 %v119
    %273 = vmatpush.xpose.msra.mxu0 %v115
    %274 = vmatpush.xpose.msra.mxu0 %v111
    %275 = vmatpush.xpose.msra.mxu0 %v107
    %276 = vmatpush.xpose.msra.mxu0 %v103
    %277 = vmatpush.xpose.msra.mxu0 %v99
    %278 = vmatpush.xpose.msra.mxu0 %v95
    %279 = vmatpush.xpose.msra.mxu0 %v91
    %280 = vmatpush.xpose.msra.mxu0 %v87
    %281 = vmatpush.xpose.msra.mxu0 %v83
    %282 = vmatpush.xpose.msra.mxu0 %v79
    %283 = vmatpush.xpose.msra.mxu0 %v75
    %284 = vmatpush.xpose.msra.mxu0 %v71
    %285 = vmatpush.xpose.msra.mxu0 %v67
    %286 = vmatpush.xpose.msra.mxu0 %v63
    %287 = vmatmul.f32.gmra.mxu0 %v191
    %v288 = vpop.f32.mrf.mxu0
    %v289 = vadd.f32 %v266, %v288
    %290 = vmatmul.f32.gmra.mxu0 %v195
    %v291 = vpop.f32.mrf.mxu0
    %v292 = vadd.f32 %v269, %v291
    %293 = vdwg.mxu0
    %294 = vmatpush.xpose.msra.mxu0 %v184
    %295 = vmatpush.xpose.msra.mxu0 %v180
    %296 = vmatpush.xpose.msra.mxu0 %v176
    %297 = vmatpush.xpose.msra.mxu0 %v172
    %298 = vmatpush.xpose.msra.mxu0 %v168
    %299 = vmatpush.xpose.msra.mxu0 %v164
    %300 = vmatpush.xpose.msra.mxu0 %v160
    %301 = vmatpush.xpose.msra.mxu0 %v156
    %302 = vmatpush.xpose.msra.mxu0 %v152
    %303 = vmatpush.xpose.msra.mxu0 %v148
    %304 = vmatpush.xpose.msra.mxu0 %v144
    %305 = vmatpush.xpose.msra.mxu0 %v140
    %306 = vmatpush.xpose.msra.mxu0 %v136
    %307 = vmatpush.xpose.msra.mxu0 %v132
    %308 = vmatpush.xpose.msra.mxu0 %v128
    %309 = vmatpush.xpose.msra.mxu0 %v124
    %310 = vmatmul.f32.gmra.mxu0 %v188
    %v311 = vpop.f32.mrf.mxu0
    %v312 = vadd.f32 %v199, %v311
    %313 = vmatmul.f32.gmra.mxu0 %v192
    %v314 = vpop.f32.mrf.mxu0
    %v315 = vadd.f32 %v199, %v314
    %316 = vdwg.mxu0
    %317 = vmatpush.xpose.msra.mxu0 %v185
    %318 = vmatpush.xpose.msra.mxu0 %v181
    %319 = vmatpush.xpose.msra.mxu0 %v177
    %320 = vmatpush.xpose.msra.mxu0 %v173
    %321 = vmatpush.xpose.msra.mxu0 %v169
    %322 = vmatpush.xpose.msra.mxu0 %v165
    %323 = vmatpush.xpose.msra.mxu0 %v161
    %324 = vmatpush.xpose.msra.mxu0 %v157
    %325 = vmatpush.xpose.msra.mxu0 %v153
    %326 = vmatpush.xpose.msra.mxu0 %v149
    %327 = vmatpush.xpose.msra.mxu0 %v145
    %328 = vmatpush.xpose.msra.mxu0 %v141
    %329 = vmatpush.xpose.msra.mxu0 %v137
    %330 = vmatpush.xpose.msra.mxu0 %v133
    %331 = vmatpush.xpose.msra.mxu0 %v129
    %332 = vmatpush.xpose.msra.mxu0 %v125
    %333 = vmatmul.f32.gmra.mxu0 %v189
    %v334 = vpop.f32.mrf.mxu0
    %v335 = vadd.f32 %v312, %v334
    %336 = vmatmul.f32.gmra.mxu0 %v193
    %v337 = vpop.f32.mrf.mxu0
    %v338 = vadd.f32 %v315, %v337
    %339 = vdwg.mxu0
    %340 = vmatpush.xpose.msra.mxu0 %v186
    %341 = vmatpush.xpose.msra.mxu0 %v182
    %342 = vmatpush.xpose.msra.mxu0 %v178
    %343 = vmatpush.xpose.msra.mxu0 %v174
    %344 = vmatpush.xpose.msra.mxu0 %v170
    %345 = vmatpush.xpose.msra.mxu0 %v166
    %346 = vmatpush.xpose.msra.mxu0 %v162
    %347 = vmatpush.xpose.msra.mxu0 %v158
    %348 = vmatpush.xpose.msra.mxu0 %v154
    %349 = vmatpush.xpose.msra.mxu0 %v150
    %350 = vmatpush.xpose.msra.mxu0 %v146
    %351 = vmatpush.xpose.msra.mxu0 %v142
    %352 = vmatpush.xpose.msra.mxu0 %v138
    %353 = vmatpush.xpose.msra.mxu0 %v134
    %354 = vmatpush.xpose.msra.mxu0 %v130
    %355 = vmatpush.xpose.msra.mxu0 %v126
    %356 = vmatmul.f32.gmra.mxu0 %v190
    %v357 = vpop.f32.mrf.mxu0
    %v358 = vadd.f32 %v335, %v357
    %359 = vmatmul.f32.gmra.mxu0 %v194
    %v360 = vpop.f32.mrf.mxu0
    %v361 = vadd.f32 %v338, %v360
    %362 = vdwg.mxu0
    %363 = vmatpush.xpose.msra.mxu0 %v187
    %364 = vmatpush.xpose.msra.mxu0 %v183
    %365 = vmatpush.xpose.msra.mxu0 %v179
    %366 = vmatpush.xpose.msra.mxu0 %v175
    %367 = vmatpush.xpose.msra.mxu0 %v171
    %368 = vmatpush.xpose.msra.mxu0 %v167
    %369 = vmatpush.xpose.msra.mxu0 %v163
    %370 = vmatpush.xpose.msra.mxu0 %v159
    %371 = vmatpush.xpose.msra.mxu0 %v155
    %372 = vmatpush.xpose.msra.mxu0 %v151
    %373 = vmatpush.xpose.msra.mxu0 %v147
    %374 = vmatpush.xpose.msra.mxu0 %v143
    %375 = vmatpush.xpose.msra.mxu0 %v139
    %376 = vmatpush.xpose.msra.mxu0 %v135
    %377 = vmatpush.xpose.msra.mxu0 %v131
    %378 = vmatpush.xpose.msra.mxu0 %v127
    %379 = vmatmul.f32.gmra.mxu0 %v191
    %v380 = vpop.f32.mrf.mxu0
    %v381 = vadd.f32 %v358, %v380
    %382 = vmatmul.f32.gmra.mxu0 %v195
    %v383 = vpop.f32.mrf.mxu0
    %v384 = vadd.f32 %v361, %v383
    %385 = vdwg.mxu0
    %386 = vst [vmem:[#allocation8] sm:$0xff] %v289
    %387 = vst [vmem:[#allocation8 + $0x8] sm:$0xff] %v381
    %388 = vst [vmem:[#allocation8 + $0x10] sm:$0xff] %v292
    %389 = vst [vmem:[#allocation8 + $0x18] sm:$0xff] %v384
    // Predicated region
    $region26: #{tpu_custom_call.1} parent=1 // pred_check
      _
    $region27: #{tpu_custom_call.1} parent=1 // pred_check_branch
      %391 = sbr.rel (0) target = $region29
    $region28: #{tpu_custom_call.1} parent=1 // pred_region
      %393 = vsyncadd [#allocation4], 0
      %s394 = sshll.u32 [#allocation8], 4
      %s395 = int_to_ptr.vmem [resolvable:$true] %s394
      %s396 = sshll.u32 %s3, 4
      %s397 = int_to_ptr.hbm [resolvable:$true] %s396
      %402 = dma.vmem_to_hbm [thread:$0]  %s395, 512, %s397, [#allocation4], 256, 256, 16
    $region29: #{tpu_custom_call.1} parent=1 // pred_fallthru
      _
    // Predicated region
    $region30: #{tpu_custom_call.1} parent=1 // pred_check
      _
    $region31: #{tpu_custom_call.1} parent=1 // pred_check_branch
      %404 = sbr.rel (0) target = $region33
    $region32: #{tpu_custom_call.1} parent=1 // pred_region
      %406 = dma.done [#allocation4], 512
    $region33: #{tpu_custom_call.1} parent=1 // pred_fallthru
      _
    %407 = vsyncpa [#allocation3], 1
    %408 = vsyncpa [#allocation6], 1
    %409 = vsyncpa [#allocation4], 1

</llo_original>
